<compile_context>
chip_gen: v5e
topology: v5e:2x2
jax: 0.10.0
libtpu: 0.0.40
codegen_flags: <defaults>
</compile_context>

<pallas_src>
import functools

import jax
import jax.numpy as jnp
from jax.experimental import pallas as pl
from jax.experimental.pallas import tpu as pltpu


def _conv_bn_silu_kernel(*refs, K, TH):
    """One (batch, row-tile) grid step.

    refs (K > 1): x_ref    (1, TH, Wp*C1)        bf16 main rows of the tile
                  halo_ref (1, 1, K-1, Wp*C1)    bf16 halo rows below the tile
                  w_ref    (K, Wp*C1, Wo*C2)     bf16 band-folded conv weights
                  scale_ref/bias_ref (1, Wo*C2)  f32 folded BN params
                  o_ref    (1, TH, Wo*C2)        f32 output tile (lane-dense)
    refs (K == 1): same without halo_ref.
    """
    if K > 1:
        x_ref, halo_ref, w_ref, scale_ref, bias_ref, o_ref = refs
        # (TH + K - 1, Wp*C1): tile rows followed by the K-1 halo rows.
        xb = jnp.concatenate([x_ref[0], halo_ref[0, 0]], axis=0)
    else:
        x_ref, w_ref, scale_ref, bias_ref, o_ref = refs
        xb = x_ref[0]

    wo_c2 = o_ref.shape[-1]

    # Band matmul per kh: contraction = Wp*C1, output lanes = Wo*C2.
    acc = jnp.zeros((TH, wo_c2), jnp.float32)
    for kh in range(K):                           # static unroll, K is small (1 or 3)
        acc = acc + jnp.dot(xb[kh:kh + TH], w_ref[kh],
                            preferred_element_type=jnp.float32)

    # Fused inference BatchNorm + SiLU in f32, then a lane-dense store.
    y = acc * scale_ref[0] + bias_ref[0]
    y = y * jax.nn.sigmoid(y)
    o_ref[0] = y.astype(o_ref.dtype)


def _pick_row_tile(ho: int) -> int:
    """Largest multiple-of-8 divisor of `ho` (<= 64) that still gives >= 2 row
    tiles; fall back to the full height (block == full dim, so the (8,128)
    rule is still satisfied). Capped so the f32 accumulator stays small."""
    for cand in (64, 32, 16, 8):
        if ho % cand == 0 and cand < ho:
            return cand
    return ho


def _fold_weights(weight_oihw, wp, wo, k, dtype):
    """(C2, C1, K, K) -> (K, Wp*C1, Wo*C2) band matrices for the packed-lane matmul.

    w_fold[kh, w_in*C1 + c1, w_out*C2 + c2] = weight[c2, c1, kh, w_in - w_out]
    when 0 <= w_in - w_out < K, else 0. Built once in the wrapper (tiny)."""
    c2, c1 = weight_oihw.shape[0], weight_oihw.shape[1]
    w_kkio = jnp.transpose(weight_oihw, (2, 3, 1, 0)).astype(jnp.float32)  # (K,K,C1,C2)
    offs = jnp.arange(wp)[:, None] - jnp.arange(wo)[None, :]               # (Wp, Wo)
    planes = []
    for kh in range(k):
        plane = jnp.zeros((wp, c1, wo, c2), jnp.float32)
        for kw in range(k):
            m = (offs == kw).astype(jnp.float32)                           # (Wp, Wo)
            plane = plane + m[:, None, :, None] * w_kkio[kh, kw][None, :, None, :]
        planes.append(plane.reshape(wp * c1, wo * c2))
    return jnp.stack(planes).astype(dtype)                                 # (K, Wp*C1, Wo*C2)


def conv_bn_silu(x_nchw, weight_oihw, gamma, beta, run_mean, run_var,
                 *, k=3, s=1, p=None, eps=1e-5):
    """Forward of YOLO `Conv` (act=True, groups=1, stride=1). x_nchw: (N, C1, H, W)."""
    assert s == 1, "stride 1 only (see TODO)"
    if p is None:
        p = k // 2  # autopad

    N, C1, H, W = x_nchw.shape
    C2 = weight_oihw.shape[0]
    Hp, Wp = H + 2 * p, W + 2 * p
    Ho, Wo = Hp - k + 1, Wp - k + 1

    # Layout glue (fused by XLA into the one relayout pass the NCHW boundary
    # forces anyway): NCHW->NHWC, zero pad, pack (W, C1) into lanes, cast bf16.
    x_nhwc = jnp.transpose(x_nchw, (0, 2, 3, 1))
    x_pad = jnp.pad(x_nhwc, ((0, 0), (p, p), (p, p), (0, 0)))
    x_packed = x_pad.reshape(N, Hp, Wp * C1).astype(jnp.bfloat16)

    w_fold = _fold_weights(weight_oihw, Wp, Wo, k, jnp.bfloat16)   # (K, Wp*C1, Wo*C2)

    # Folded inference BatchNorm, kept in f32 and tiled to the packed layout.
    scale = (gamma.astype(jnp.float32) /
             jnp.sqrt(run_var.astype(jnp.float32) + eps))
    bias = beta.astype(jnp.float32) - run_mean.astype(jnp.float32) * scale
    scale_p = jnp.tile(scale, Wo).reshape(1, Wo * C2)
    bias_p = jnp.tile(bias, Wo).reshape(1, Wo * C2)

    TH = _pick_row_tile(Ho)
    n_row_tiles = Ho // TH

    # Main rows: exactly the Ho rows addressed by the TH-row tiles.
    x_main = x_packed[:, :n_row_tiles * TH]                        # (N, Ho, Wp*C1)

    in_arrays = [x_main]
    in_specs = [pl.BlockSpec((1, TH, Wp * C1), lambda n, t: (n, t, 0))]
    if k > 1:
        # Halo rows for tile t: padded-image rows [t*TH + TH, t*TH + TH + K - 1).
        halo_idx = (jnp.arange(n_row_tiles)[:, None] * TH + TH
                    + jnp.arange(k - 1)[None, :])                  # (T, K-1)
        x_halo = x_packed[:, halo_idx]                             # (N, T, K-1, Wp*C1)
        in_arrays.append(x_halo)
        in_specs.append(
            pl.BlockSpec((1, 1, k - 1, Wp * C1), lambda n, t: (n, t, 0, 0)))

    in_arrays += [w_fold, scale_p, bias_p]
    in_specs += [
        pl.BlockSpec((k, Wp * C1, Wo * C2), lambda n, t: (0, 0, 0)),   # resident
        pl.BlockSpec((1, Wo * C2), lambda n, t: (0, 0)),               # resident
        pl.BlockSpec((1, Wo * C2), lambda n, t: (0, 0)),               # resident
    ]

    # Explicit VMEM budget (double-buffered input/halo/output blocks + resident
    # weights/BN), with headroom, capped below v7x's 64 MiB physical VMEM.
    blk_bytes = (2 * TH * Wp * C1 * 2                    # bf16 main input block x2
                 + 2 * max(k - 1, 0) * Wp * C1 * 2       # bf16 halo block x2
                 + 2 * k * Wp * C1 * Wo * C2 * 2         # bf16 folded weights
                 + 2 * 2 * Wo * C2 * 4                   # BN scale + bias
                 + 2 * TH * Wo * C2 * 4)                 # f32 output block x2
    vmem_limit = int(min(48 * 1024 * 1024, max(16 * 1024 * 1024, 4 * blk_bytes)))

    kern = functools.partial(_conv_bn_silu_kernel, K=k, TH=TH)

    out_packed = pl.pallas_call(
        kern,
        out_shape=jax.ShapeDtypeStruct((N, Ho, Wo * C2), jnp.float32),
        grid=(N, n_row_tiles),
        in_specs=in_specs,
        out_specs=pl.BlockSpec((1, TH, Wo * C2), lambda n, t: (n, t, 0)),
        compiler_params=pltpu.CompilerParams(
            dimension_semantics=("parallel", "parallel"),
            vmem_limit_bytes=vmem_limit,
        ),
    )(*in_arrays)

    # (N, Ho, Wo*C2) -> (N, Ho, Wo, C2) -> PyTorch NCHW.
    out_nhwc = out_packed.reshape(N, Ho, Wo, C2)
    return jnp.transpose(out_nhwc, (0, 3, 1, 2))


def _reference(x_nchw, weight_oihw, gamma, beta, run_mean, run_var, *, p, eps=1e-5):
    y = jax.lax.conv_general_dilated(
        x_nchw.astype(jnp.float32), weight_oihw.astype(jnp.float32),
        window_strides=(1, 1), padding=[(p, p), (p, p)],
        dimension_numbers=("NCHW", "OIHW", "NCHW"))
    scale = gamma / jnp.sqrt(run_var + eps)
    bias = beta - run_mean * scale
    y = y * scale[None, :, None, None] + bias[None, :, None, None]
    return y * jax.nn.sigmoid(y)


if __name__ == "__main__":
    # Conv(c1=4, c2=8, k=3, s=1) -> autopad p=1
    N, C1, C2, H, W, K = 2, 4, 8, 16, 16, 3
    key = jax.random.PRNGKey(0)
    kx, kw_, kg, kb, km, kv = jax.random.split(key, 6)

    x = jax.random.normal(kx, (N, C1, H, W), dtype=jnp.float32)
    weight = 0.1 * jax.random.normal(kw_, (C2, C1, K, K), dtype=jnp.float32)  # OIHW, no bias
    gamma = 1.0 + 0.1 * jax.random.normal(kg, (C2,), dtype=jnp.float32)
    beta = 0.1 * jax.random.normal(kb, (C2,), dtype=jnp.float32)
    run_mean = 0.1 * jax.random.normal(km, (C2,), dtype=jnp.float32)
    run_var = jnp.abs(1.0 + 0.1 * jax.random.normal(kv, (C2,), dtype=jnp.float32))

    out = conv_bn_silu(x, weight, gamma, beta, run_mean, run_var, k=K, s=1)
    out = jax.block_until_ready(out)
    assert out.shape == (N, C2, H, W), out.shape

    # Tight check: same bf16-rounded inputs as the kernel (validates indexing /
    # halo / band-matmul structure; only f32 accumulation order differs).
    x_q = x.astype(jnp.bfloat16).astype(jnp.float32)
    w_q = weight.astype(jnp.bfloat16).astype(jnp.float32)
    ref_q = _reference(x_q, w_q, gamma, beta, run_mean, run_var, p=K // 2)
    assert jnp.allclose(out, ref_q, atol=2e-3, rtol=2e-3), \
        float(jnp.max(jnp.abs(out - ref_q)))

    # Loose check vs. the full-f32 PyTorch-equivalent module (bf16 input quant).
    ref = _reference(x, weight, gamma, beta, run_mean, run_var, p=K // 2)
    assert jnp.allclose(out, ref, atol=5e-2, rtol=5e-2), \
        float(jnp.max(jnp.abs(out - ref)))

    print("KERNEL_OK")
</pallas_src>

<mosaic_0001>
module attributes {stable_mosaic.version = 11 : i64} {
  func.func @_conv_bn_silu_kernel(%arg0: i32, %arg1: i32, %arg2: memref<1x8x72xbf16, #tpu.memory_space<vmem>>, %arg3: memref<1x1x2x72xbf16, #tpu.memory_space<vmem>>, %arg4: memref<3x72x128xbf16, #tpu.memory_space<vmem>>, %arg5: memref<1x128xf32, #tpu.memory_space<vmem>>, %arg6: memref<1x128xf32, #tpu.memory_space<vmem>>, %arg7: memref<1x8x128xf32, #tpu.memory_space<vmem>>) attributes {dimension_semantics = [#tpu.dimension_semantics<parallel>, #tpu.dimension_semantics<parallel>], iteration_bounds = array<i64: 2, 2>, scalar_prefetch = 0 : i64, scratch_operands = 0 : i64, tpu.core_type = #tpu.core_type<tc>, window_params = [{transform_indices = @transform_0, window_bounds = array<i64: 1, 8, 72>}, {transform_indices = @transform_1, window_bounds = array<i64: 1, 1, 2, 72>}, {pipeline_mode = #tpu.pipeline_mode<synchronous>, transform_indices = @transform_2, window_bounds = array<i64: 3, 72, 128>}, {pipeline_mode = #tpu.pipeline_mode<synchronous>, transform_indices = @transform_3, window_bounds = array<i64: 1, 128>}, {pipeline_mode = #tpu.pipeline_mode<synchronous>, transform_indices = @transform_4, window_bounds = array<i64: 1, 128>}, {transform_indices = @transform_5, window_bounds = array<i64: 1, 8, 128>}]} {
    %c0 = arith.constant 0 : index
    %c0_0 = arith.constant 0 : index
    %c0_1 = arith.constant 0 : index
    %0 = vector.load %arg2[%c0, %c0_0, %c0_1] : memref<1x8x72xbf16, #tpu.memory_space<vmem>>, vector<1x8x72xbf16>
    %1 = vector.shape_cast %0 : vector<1x8x72xbf16> to vector<8x72xbf16>
    %c0_2 = arith.constant 0 : index
    %c0_3 = arith.constant 0 : index
    %c0_4 = arith.constant 0 : index
    %c0_5 = arith.constant 0 : index
    %2 = vector.load %arg3[%c0_2, %c0_3, %c0_4, %c0_5] : memref<1x1x2x72xbf16, #tpu.memory_space<vmem>>, vector<1x1x2x72xbf16>
    %3 = vector.shape_cast %2 : vector<1x1x2x72xbf16> to vector<2x72xbf16>
    %4 = tpu.concatenate %1, %3 in 0 : vector<8x72xbf16>, vector<2x72xbf16> -> vector<10x72xbf16>
    %cst = arith.constant 0.000000e+00 : f32
    %5 = vector.broadcast %cst : f32 to vector<8x128xf32>
    %6 = vector.extract_strided_slice %4 {offsets = [0, 0], sizes = [8, 72], strides = [1, 1]} : vector<10x72xbf16> to vector<8x72xbf16>
    %c0_6 = arith.constant 0 : index
    %c0_7 = arith.constant 0 : index
    %c0_8 = arith.constant 0 : index
    %7 = vector.load %arg4[%c0_6, %c0_7, %c0_8] : memref<3x72x128xbf16, #tpu.memory_space<vmem>>, vector<1x72x128xbf16>
    %8 = vector.shape_cast %7 : vector<1x72x128xbf16> to vector<72x128xbf16>
    %cst_9 = arith.constant dense<0.000000e+00> : vector<8x128xf32>
    %9 = tpu.matmul %6, %8, %cst_9 {dimension_numbers = #tpu.dot_dimension_numbers<[1], [0], [0], [1], [0, 0, 1, 1], [], []>} : vector<8x72xbf16>, vector<72x128xbf16>, vector<8x128xf32> -> vector<8x128xf32>
    %10 = arith.addf %5, %9 : vector<8x128xf32>
    %11 = vector.extract_strided_slice %4 {offsets = [1, 0], sizes = [8, 72], strides = [1, 1]} : vector<10x72xbf16> to vector<8x72xbf16>
    %c1 = arith.constant 1 : index
    %c0_10 = arith.constant 0 : index
    %c0_11 = arith.constant 0 : index
    %12 = vector.load %arg4[%c1, %c0_10, %c0_11] : memref<3x72x128xbf16, #tpu.memory_space<vmem>>, vector<1x72x128xbf16>
    %13 = vector.shape_cast %12 : vector<1x72x128xbf16> to vector<72x128xbf16>
    %cst_12 = arith.constant dense<0.000000e+00> : vector<8x128xf32>
    %14 = tpu.matmul %11, %13, %cst_12 {dimension_numbers = #tpu.dot_dimension_numbers<[1], [0], [0], [1], [0, 0, 1, 1], [], []>} : vector<8x72xbf16>, vector<72x128xbf16>, vector<8x128xf32> -> vector<8x128xf32>
    %15 = arith.addf %10, %14 : vector<8x128xf32>
    %16 = vector.extract_strided_slice %4 {offsets = [2, 0], sizes = [8, 72], strides = [1, 1]} : vector<10x72xbf16> to vector<8x72xbf16>
    %c2 = arith.constant 2 : index
    %c0_13 = arith.constant 0 : index
    %c0_14 = arith.constant 0 : index
    %17 = vector.load %arg4[%c2, %c0_13, %c0_14] : memref<3x72x128xbf16, #tpu.memory_space<vmem>>, vector<1x72x128xbf16>
    %18 = vector.shape_cast %17 : vector<1x72x128xbf16> to vector<72x128xbf16>
    %cst_15 = arith.constant dense<0.000000e+00> : vector<8x128xf32>
    %19 = tpu.matmul %16, %18, %cst_15 {dimension_numbers = #tpu.dot_dimension_numbers<[1], [0], [0], [1], [0, 0, 1, 1], [], []>} : vector<8x72xbf16>, vector<72x128xbf16>, vector<8x128xf32> -> vector<8x128xf32>
    %20 = arith.addf %15, %19 : vector<8x128xf32>
    %c0_16 = arith.constant 0 : index
    %c0_17 = arith.constant 0 : index
    %21 = vector.load %arg5[%c0_16, %c0_17] : memref<1x128xf32, #tpu.memory_space<vmem>>, vector<1x128xf32>
    %22 = vector.shape_cast %21 : vector<1x128xf32> to vector<128xf32>
    %23 = vector.shape_cast %22 : vector<128xf32> to vector<1x128xf32>
    %24 = vector.broadcast %23 : vector<1x128xf32> to vector<8x128xf32>
    %25 = arith.mulf %20, %24 : vector<8x128xf32>
    %c0_18 = arith.constant 0 : index
    %c0_19 = arith.constant 0 : index
    %26 = vector.load %arg6[%c0_18, %c0_19] : memref<1x128xf32, #tpu.memory_space<vmem>>, vector<1x128xf32>
    %27 = vector.shape_cast %26 : vector<1x128xf32> to vector<128xf32>
    %28 = vector.shape_cast %27 : vector<128xf32> to vector<1x128xf32>
    %29 = vector.broadcast %28 : vector<1x128xf32> to vector<8x128xf32>
    %30 = arith.addf %25, %29 : vector<8x128xf32>
    %31 = arith.negf %30 : vector<8x128xf32>
    %32 = math.exp %31 : vector<8x128xf32>
    %cst_20 = arith.constant 1.000000e+00 : f32
    %33 = vector.broadcast %cst_20 : f32 to vector<8x128xf32>
    %34 = arith.addf %33, %32 : vector<8x128xf32>
    %35 = arith.divf %33, %34 : vector<8x128xf32>
    %36 = arith.mulf %30, %35 : vector<8x128xf32>
    %c0_21 = arith.constant 0 : index
    %c0_22 = arith.constant 0 : index
    %c0_23 = arith.constant 0 : index
    %37 = vector.load %arg7[%c0_21, %c0_22, %c0_23] : memref<1x8x128xf32, #tpu.memory_space<vmem>>, vector<1x8x128xf32>
    %38 = vector.shape_cast %37 : vector<1x8x128xf32> to vector<8x128xf32>
    %39 = vector.shape_cast %36 : vector<8x128xf32> to vector<1x8x128xf32>
    tpu.vector_store %arg7[%c0_21, %c0_22, %c0_23], %39 {strides = array<i32>} : memref<1x8x128xf32, #tpu.memory_space<vmem>>, vector<1x8x128xf32>,
    return
  }
  func.func @transform_0(%arg0: i32, %arg1: i32) -> (i32, i32, i32) {
    %c0_i32 = arith.constant 0 : i32
    %c0_i32_0 = arith.constant 0 : i32
    return %arg0, %arg1, %c0_i32 : i32, i32, i32
  }
  func.func @transform_1(%arg0: i32, %arg1: i32) -> (i32, i32, i32, i32) {
    %c0_i32 = arith.constant 0 : i32
    %c0_i32_0 = arith.constant 0 : i32
    %c0_i32_1 = arith.constant 0 : i32
    return %arg0, %arg1, %c0_i32, %c0_i32_0 : i32, i32, i32, i32
  }
  func.func @transform_2(%arg0: i32, %arg1: i32) -> (i32, i32, i32) {
    %c0_i32 = arith.constant 0 : i32
    %c0_i32_0 = arith.constant 0 : i32
    %c0_i32_1 = arith.constant 0 : i32
    %c0_i32_2 = arith.constant 0 : i32
    return %c0_i32, %c0_i32_0, %c0_i32_1 : i32, i32, i32
  }
  func.func @transform_3(%arg0: i32, %arg1: i32) -> (i32, i32) {
    %c0_i32 = arith.constant 0 : i32
    %c0_i32_0 = arith.constant 0 : i32
    %c0_i32_1 = arith.constant 0 : i32
    return %c0_i32, %c0_i32_0 : i32, i32
  }
  func.func @transform_4(%arg0: i32, %arg1: i32) -> (i32, i32) {
    %c0_i32 = arith.constant 0 : i32
    %c0_i32_0 = arith.constant 0 : i32
    %c0_i32_1 = arith.constant 0 : i32
    return %c0_i32, %c0_i32_0 : i32, i32
  }
  func.func @transform_5(%arg0: i32, %arg1: i32) -> (i32, i32, i32) {
    %c0_i32 = arith.constant 0 : i32
    %c0_i32_0 = arith.constant 0 : i32
    return %arg0, %arg1, %c0_i32 : i32, i32, i32
  }
}

</mosaic_0001>

<llo_original>
// kernel: tpu_custom_call.1
$region0: #{tpu_custom_call.1}
  #allocation0 [shape = 'u32[]', space=smem, size = 0x4, offset = 0x4, fixed_abs, tag = 'smem constant byte address 0x4 - core index']
  #allocation1 [shape = 'u32[72,128]{1,0:T(1,128)}', space=vmem, size = 0x9000, scoped, tag = 'internal scratch']
  %s0 = inlined_call_operand.hbm [shape: bf16[2,16,72], index: 0, kind: input, shape index: {}]
  %s1 = inlined_call_operand.hbm [shape: bf16[2,2,2,72], index: 1, kind: input, shape index: {}]
  %s2 = inlined_call_operand.hbm [shape: bf16[3,72,128], index: 2, kind: input, shape index: {}]
  %s3 = inlined_call_operand.vmem [shape: f32[1,128], index: 3, kind: input, shape index: {}]
  %s4 = inlined_call_operand.vmem [shape: f32[1,128], index: 4, kind: input, shape index: {}]
  %s5 = inlined_call_operand.hbm [shape: f32[2,16,128], index: 5, kind: output, shape index: {}]
  %s6 = sld [smem:[#allocation0]]
  $region65: #{tpu_custom_call.1} parent=0
    _
  %s8 = ssub.s32 1, %s6
  %s9 = scalar_select 0, %s8, %s6
  $region1: #{tpu_custom_call.1} parent=0
    #allocation2 [shape = 'u8[4096]{0}', space=vmem, size = 0x1000, scoped, tag = 'input window, operand 0']
    #allocation3 [shape = 's32[2]{0}', space=sflag, size = 0x8, scoped, tag = 'scoped memory for tpu_custom_call.1']
    #allocation4 [shape = 's32[2]{0}', space=sflag, size = 0x8, scoped, tag = 'scoped memory for tpu_custom_call.1']
    #allocation5 [shape = 'u8[1024]{0}', space=vmem, size = 0x400, scoped, tag = 'input window, operand 1']
    #allocation6 [shape = 's32[2]{0}', space=sflag, size = 0x8, scoped, tag = 'scoped memory for tpu_custom_call.1']
    #allocation7 [shape = 'u8[55296]{0}', space=vmem, size = 0xd800, scoped, tag = 'input window, operand 2, single buffered']
    #allocation8 [shape = 'u8[8192]{0}', space=vmem, size = 0x2000, scoped, tag = 'output window, operand 0']
    %10 = vsyncpa [#allocation3], 0
    %s11 = scalar_lea.sflag [#allocation3], 1
    %12 = vsyncpa %s11, 0
    %13 = vsyncpa [#allocation6], 0
    %s14 = scalar_lea.sflag [#allocation6], 1
    %15 = vsyncpa %s14, 0
    %16 = vsyncpa [#allocation4], 0
    %s17 = scalar_lea.sflag [#allocation4], 1
    %18 = vsyncpa %s17, 0
    loop: start=0, step=1, limit=6
    $region2: #{tpu_custom_call.1} parent=1 // loop_pre_header
      _
    $region3: #{tpu_custom_call.1} parent=1 // loop_header
      %s20 = sphi 0, %s24
      %p21 = scmp.ge.s32.totalorder %s20, 6
      %s27 = sphi 0, %s39
      %s28 = sphi 0, %s35
      %s29 = sphi 0, %s27
      %s30 = sphi 0, %s28
      %s31 = sphi 0, %s29
      %s32 = sphi 0, %s30
      %s44 = sphi 0, %s46
      %s47 = sphi 0, %s44
      %s48 = sphi 0, %s47
      %s64 = sphi 0, %s48
      %s72 = sphi 0, %s74
      %s75 = sphi 0, %s72
      %s76 = sphi 0, %s75
      %s92 = sphi 0, %s76
      %s96 = sphi 0, %s96
      %s98 = sphi 0, %s96
      %s99 = sphi 0, %s98
      %s113 = sphi 0, %s99
      %s117 = sphi 0, %s117
      %s119 = sphi 0, %s117
      %s120 = sphi 0, %s119
      %s134 = sphi 0, %s120
      %s138 = sphi 0, %s138
      %s140 = sphi 0, %s138
      %s141 = sphi 0, %s140
      %s155 = sphi 0, %s141
      %s163 = sphi 0, %s165
      %s166 = sphi 0, %s163
      %s167 = sphi 0, %s166
      %s183 = sphi 0, %s167
    $region4: #{tpu_custom_call.1} parent=1 // loop_header_branch
      %23 = sbr.rel (%p21) target = $region8
    $region5: #{tpu_custom_call.1} parent=1 // loop_body
      %s25 = ssub.s32 %s20, 1
      %s26 = ssub.s32 %s20, 2
      %s33 = sadd.s32 1, %s28
      %p34 = scmp.ge.s32.totalorder %s33, 2
      %s35 = scalar_select %p34, 0, %s33
      %s36 = sadd.s32 1, %s27
      %s37 = scalar_select %p34, %s36, %s27
      %p38 = scmp.ge.s32.totalorder %s37, 2
      %s39 = scalar_select %p38, 0, %s37
      %s40 = ssub.s32 %s27, %s39
      %s41 = ssub.s32 %s28, %s35
      %s42 = sor.u32 %s40, %s41
      %p43 = scmp.eq.s32.totalorder %s42, 0
      %s45 = sadd.s32 %s44, 1
      %s46 = scalar_select %p43, %s44, %s45
      %p49 = pneg %p43
      %p50 = scmp.eq.s32.totalorder %s20, 3
      %p51 = por %p49, %p50
      %p52 = scmp.ne.s32.totalorder %s44, %s47
      %p53 = scmp.eq.s32.totalorder %s20, 0
      %p54 = por %p52, %p53
      %p55 = scmp.ne.s32.totalorder %s44, %s47
      %p56 = scmp.eq.s32.totalorder %s25, 3
      %p57 = por %p55, %p56
      %p58 = scmp.ne.s32.totalorder %s47, %s48
      %p59 = scmp.eq.s32.totalorder %s25, 0
      %p60 = por %p58, %p59
      %p61 = scmp.ne.s32.totalorder %s47, %s48
      %p62 = scmp.eq.s32.totalorder %s26, 3
      %p63 = por %p61, %p62
      %p65 = scmp.ne.s32.totalorder %s48, %s64
      %p66 = scmp.eq.s32.totalorder %s26, 0
      %p67 = por %p65, %p66
      %s68 = ssub.s32 %s27, %s39
      %s69 = ssub.s32 %s28, %s35
      %s70 = sor.u32 %s68, %s69
      %p71 = scmp.eq.s32.totalorder %s70, 0
      %s73 = sadd.s32 %s72, 1
      %s74 = scalar_select %p71, %s72, %s73
      %p77 = pneg %p71
      %p78 = scmp.eq.s32.totalorder %s20, 3
      %p79 = por %p77, %p78
      %p80 = scmp.ne.s32.totalorder %s72, %s75
      %p81 = scmp.eq.s32.totalorder %s20, 0
      %p82 = por %p80, %p81
      %p83 = scmp.ne.s32.totalorder %s72, %s75
      %p84 = scmp.eq.s32.totalorder %s25, 3
      %p85 = por %p83, %p84
      %p86 = scmp.ne.s32.totalorder %s75, %s76
      %p87 = scmp.eq.s32.totalorder %s25, 0
      %p88 = por %p86, %p87
      %p89 = scmp.ne.s32.totalorder %s75, %s76
      %p90 = scmp.eq.s32.totalorder %s26, 3
      %p91 = por %p89, %p90
      %p93 = scmp.ne.s32.totalorder %s76, %s92
      %p94 = scmp.eq.s32.totalorder %s26, 0
      %p95 = por %p93, %p94
      %s97 = sadd.s32 %s96, 1
      %p100 = scmp.eq.s32.totalorder %s20, 3
      %p101 = scmp.ne.s32.totalorder %s96, %s98
      %p102 = scmp.eq.s32.totalorder %s20, 0
      %p103 = por %p101, %p102
      %p104 = scmp.ne.s32.totalorder %s96, %s98
      %p105 = scmp.eq.s32.totalorder %s25, 3
      %p106 = por %p104, %p105
      %p107 = scmp.ne.s32.totalorder %s98, %s99
      %p108 = scmp.eq.s32.totalorder %s25, 0
      %p109 = por %p107, %p108
      %p110 = scmp.ne.s32.totalorder %s98, %s99
      %p111 = scmp.eq.s32.totalorder %s26, 3
      %p112 = por %p110, %p111
      %p114 = scmp.ne.s32.totalorder %s99, %s113
      %p115 = scmp.eq.s32.totalorder %s26, 0
      %p116 = por %p114, %p115
      %s118 = sadd.s32 %s117, 1
      %p121 = scmp.eq.s32.totalorder %s20, 3
      %p122 = scmp.ne.s32.totalorder %s117, %s119
      %p123 = scmp.eq.s32.totalorder %s20, 0
      %p124 = por %p122, %p123
      %p125 = scmp.ne.s32.totalorder %s117, %s119
      %p126 = scmp.eq.s32.totalorder %s25, 3
      %p127 = por %p125, %p126
      %p128 = scmp.ne.s32.totalorder %s119, %s120
      %p129 = scmp.eq.s32.totalorder %s25, 0
      %p130 = por %p128, %p129
      %p131 = scmp.ne.s32.totalorder %s119, %s120
      %p132 = scmp.eq.s32.totalorder %s26, 3
      %p133 = por %p131, %p132
      %p135 = scmp.ne.s32.totalorder %s120, %s134
      %p136 = scmp.eq.s32.totalorder %s26, 0
      %p137 = por %p135, %p136
      %s139 = sadd.s32 %s138, 1
      %p142 = scmp.eq.s32.totalorder %s20, 3
      %p143 = scmp.ne.s32.totalorder %s138, %s140
      %p144 = scmp.eq.s32.totalorder %s20, 0
      %p145 = por %p143, %p144
      %p146 = scmp.ne.s32.totalorder %s138, %s140
      %p147 = scmp.eq.s32.totalorder %s25, 3
      %p148 = por %p146, %p147
      %p149 = scmp.ne.s32.totalorder %s140, %s141
      %p150 = scmp.eq.s32.totalorder %s25, 0
      %p151 = por %p149, %p150
      %p152 = scmp.ne.s32.totalorder %s140, %s141
      %p153 = scmp.eq.s32.totalorder %s26, 3
      %p154 = por %p152, %p153
      %p156 = scmp.ne.s32.totalorder %s141, %s155
      %p157 = scmp.eq.s32.totalorder %s26, 0
      %p158 = por %p156, %p157
      %s159 = ssub.s32 %s27, %s39
      %s160 = ssub.s32 %s28, %s35
      %s161 = sor.u32 %s159, %s160
      %p162 = scmp.eq.s32.totalorder %s161, 0
      %s164 = sadd.s32 %s163, 1
      %s165 = scalar_select %p162, %s163, %s164
      %p168 = pneg %p162
      %p169 = scmp.eq.s32.totalorder %s20, 3
      %p170 = por %p168, %p169
      %p171 = scmp.ne.s32.totalorder %s163, %s166
      %p172 = scmp.eq.s32.totalorder %s20, 0
      %p173 = por %p171, %p172
      %p174 = scmp.ne.s32.totalorder %s163, %s166
      %p175 = scmp.eq.s32.totalorder %s25, 3
      %p176 = por %p174, %p175
      %p177 = scmp.ne.s32.totalorder %s166, %s167
      %p178 = scmp.eq.s32.totalorder %s25, 0
      %p179 = por %p177, %p178
      %p180 = scmp.ne.s32.totalorder %s166, %s167
      %p181 = scmp.eq.s32.totalorder %s26, 3
      %p182 = por %p180, %p181
      %p184 = scmp.ne.s32.totalorder %s167, %s183
      %p185 = scmp.eq.s32.totalorder %s26, 0
      %p186 = por %p184, %p185
      %p187 = scmp.le.s32.totalorder 1, %s20
      %p188 = scmp.lt.s32.totalorder %s20, 5
      %p189 = pnand %p187, %p188
      %p190 = pneg %p189
      // Predicated region
      $region9: #{tpu_custom_call.1} parent=5 // pred_check
        _
      $region10: #{tpu_custom_call.1} parent=5 // pred_check_branch
        %192 = sbr.rel (%p189) target = $region12
      $region11: #{tpu_custom_call.1} parent=5 // pred_region
        %s193 = ssub.s32 %s20, 1
        // Predicated region
        $region13: #{tpu_custom_call.1} parent=11 // pred_check
          %p194 = pneg %p109
        $region14: #{tpu_custom_call.1} parent=11 // pred_check_branch
          %196 = sbr.rel (%p194) target = $region16
        $region15: #{tpu_custom_call.1} parent=11 // pred_region
          %198 = vsyncadd [#allocation6], 0
          %s199 = sshll.u32 %s2, 4
          %s200 = int_to_ptr.hbm [resolvable:$true] %s199
          %s201 = sshll.u32 [#allocation7], 4
          %s202 = int_to_ptr.vmem [resolvable:$true] %s201
          %207 = dma.hbm_to_vmem [thread:$0]  %s200, 1728, %s202, [#allocation6], 64, 64, 4
        $region16: #{tpu_custom_call.1} parent=11 // pred_fallthru
          _
        // Predicated region
        $region17: #{tpu_custom_call.1} parent=11 // pred_check
          %p208 = pneg %p130
        $region18: #{tpu_custom_call.1} parent=11 // pred_check_branch
          %210 = sbr.rel (%p208) target = $region20
        $region19: #{tpu_custom_call.1} parent=11 // pred_region
          _
        $region20: #{tpu_custom_call.1} parent=11 // pred_fallthru
          _
        // Predicated region
        $region21: #{tpu_custom_call.1} parent=11 // pred_check
          %p211 = pneg %p151
        $region22: #{tpu_custom_call.1} parent=11 // pred_check_branch
          %213 = sbr.rel (%p211) target = $region24
        $region23: #{tpu_custom_call.1} parent=11 // pred_region
          _
        $region24: #{tpu_custom_call.1} parent=11 // pred_fallthru
          _
      $region12: #{tpu_custom_call.1} parent=5 // pred_fallthru
        _
      %p214 = scmp.lt.s32.totalorder %s20, 4
      // Predicated region
      $region25: #{tpu_custom_call.1} parent=5 // pred_check
        %p215 = pneg %p214
      $region26: #{tpu_custom_call.1} parent=5 // pred_check_branch
        %217 = sbr.rel (%p215) target = $region28
      $region27: #{tpu_custom_call.1} parent=5 // pred_region
        // Predicated region
        $region29: #{tpu_custom_call.1} parent=27 // pred_check
          %p218 = pneg %p54
        $region30: #{tpu_custom_call.1} parent=27 // pred_check_branch
          %220 = sbr.rel (%p218) target = $region32
        $region31: #{tpu_custom_call.1} parent=27 // pred_region
          %s221 = sand.u32 %s44, 1
          %s222 = scalar_lea.sflag [#allocation3], %s221
          %s223 = sand.u32 %s44, 1
          %s224 = smul.addr %s223, 4
          %s225 = scalar_lea.vmem [#allocation2], %s224
          %227 = vsyncadd %s222, 0
          %s228 = smul.addr %s27, 2
          %s229 = sadd.s32 %s28, %s228
          %s230 = smul.addr %s229, 4
          %s231 = scalar_lea.hbm %s0, %s230
          %s233 = sshll.u32 %s231, 4
          %s234 = int_to_ptr.hbm [resolvable:$true] %s233
          %s235 = sshll.u32 %s225, 4
          %s236 = int_to_ptr.vmem [resolvable:$true] %s235
          %238 = dma.hbm_to_vmem [thread:$0]  %s234, 64, %s236, %s222
        $region32: #{tpu_custom_call.1} parent=27 // pred_fallthru
          _
        // Predicated region
        $region33: #{tpu_custom_call.1} parent=27 // pred_check
          %p239 = pneg %p82
        $region34: #{tpu_custom_call.1} parent=27 // pred_check_branch
          %241 = sbr.rel (%p239) target = $region36
        $region35: #{tpu_custom_call.1} parent=27 // pred_region
          %s242 = sand.u32 %s20, 1
          %s243 = scalar_lea.sflag [#allocation6], %s242
          %s244 = sand.u32 %s72, 1
          %s245 = scalar_lea.vmem [#allocation5], %s244
          %247 = vsyncadd %s243, 0
          %s248 = smul.addr %s27, 2
          %s249 = sadd.s32 %s28, %s248
          %s250 = scalar_lea.hbm %s1, %s249
          %s252 = sshll.u32 %s250, 4
          %s253 = int_to_ptr.hbm [resolvable:$true] %s252
          %s254 = sshll.u32 %s245, 4
          %s255 = int_to_ptr.vmem [resolvable:$true] %s254
          %257 = dma.hbm_to_vmem [thread:$0]  %s253, 16, %s255, %s243
        $region36: #{tpu_custom_call.1} parent=27 // pred_fallthru
          _
      $region28: #{tpu_custom_call.1} parent=5 // pred_fallthru
        _
      %p258 = scmp.le.s32.totalorder 1, %s20
      %p259 = scmp.lt.s32.totalorder %s20, 5
      %p260 = pnand %p258, %p259
      %p261 = pneg %p260
      // Predicated region
      $region37: #{tpu_custom_call.1} parent=5 // pred_check
        _
      $region38: #{tpu_custom_call.1} parent=5 // pred_check_branch
        %263 = sbr.rel (%p260) target = $region40
      $region39: #{tpu_custom_call.1} parent=5 // pred_region
        %s264 = ssub.s32 %s20, 1
        %s265 = sand.u32 %s47, 1
        %s266 = scalar_lea.sflag [#allocation3], %s265
        %s267 = sand.u32 %s47, 1
        %s268 = smul.addr %s267, 4
        %s269 = scalar_lea.vmem [#allocation2], %s268
        // Predicated region
        $region41: #{tpu_custom_call.1} parent=39 // pred_check
          %p270 = pneg %p60
        $region42: #{tpu_custom_call.1} parent=39 // pred_check_branch
          %272 = sbr.rel (%p270) target = $region44
        $region43: #{tpu_custom_call.1} parent=39 // pred_region
          %274 = dma.done %s266, 64
        $region44: #{tpu_custom_call.1} parent=39 // pred_fallthru
          _
        %s275 = sand.u32 %s25, 1
        %s276 = scalar_lea.sflag [#allocation6], %s275
        %s277 = sand.u32 %s75, 1
        %s278 = scalar_lea.vmem [#allocation5], %s277
        // Predicated region
        $region45: #{tpu_custom_call.1} parent=39 // pred_check
          %p279 = pneg %p88
        $region46: #{tpu_custom_call.1} parent=39 // pred_check_branch
          %281 = sbr.rel (%p279) target = $region48
        $region47: #{tpu_custom_call.1} parent=39 // pred_region
          %283 = dma.done %s276, 16
        $region48: #{tpu_custom_call.1} parent=39 // pred_fallthru
          _
        // Predicated region
        $region49: #{tpu_custom_call.1} parent=39 // pred_check
          %p284 = pneg %p109
        $region50: #{tpu_custom_call.1} parent=39 // pred_check_branch
          %286 = sbr.rel (%p284) target = $region52
        $region51: #{tpu_custom_call.1} parent=39 // pred_region
          %288 = dma.done [#allocation6], 1728
        $region52: #{tpu_custom_call.1} parent=39 // pred_fallthru
          _
        %s289 = sand.u32 %s47, 1
        %s290 = scalar_lea.sflag [#allocation3], %s289
        %s291 = sand.u32 %s47, 1
        %s292 = smul.addr %s291, 4
        %s293 = scalar_lea.vmem [#allocation2], %s292
        %p294 = pneg %p60
        %p295 = pneg %p57
        %s296 = sand.u32 %s25, 1
        %s297 = scalar_lea.sflag [#allocation6], %s296
        %s298 = sand.u32 %s75, 1
        %s299 = scalar_lea.vmem [#allocation5], %s298
        %p300 = pneg %p88
        %p301 = pneg %p85
        %p302 = pneg %p109
        %p303 = pneg %p106
        %p304 = pneg %p130
        %p305 = pneg %p127
        %p306 = pneg %p151
        %p307 = pneg %p148
        %p308 = pneg %p179
        %p309 = pneg %p176
        %s310 = sand.u32 %s166, 1
        %s311 = scalar_lea.sflag [#allocation4], %s310
        %s312 = sand.u32 %s166, 1
        %s313 = smul.addr %s312, 8
        %s314 = scalar_lea.vmem [#allocation8], %s313
        %v316 = vld [vmem:[%s269] sm:$0xf]
        %v317 = vld [vmem:[%s278] sm:$0x1]
        %s319 = scalar_lea.vmem [#allocation1], 4
        %320 = vst [vmem:[%s319] ss:$9 sm:$0xff] %v317
        %v321 = vld [vmem:[#allocation1] sm:$0xff]
        %vm322 = vcmask 1043456
        %v324 = vsel %vm322, %v316, %v321
        %v325 = vld [vmem:[#allocation7] sm:$0xf]
        %v326 = vld [vmem:[#allocation7 + $0x4] sm:$0xf]
        %v327 = vld [vmem:[#allocation7 + $0x8] sm:$0xf]
        %v328 = vld [vmem:[#allocation7 + $0xc] sm:$0xf]
        %v329 = vld [vmem:[#allocation7 + $0x10] sm:$0xf]
        %v330 = vld [vmem:[#allocation7 + $0x14] sm:$0xf]
        %v331 = vld [vmem:[#allocation7 + $0x18] sm:$0xf]
        %v332 = vld [vmem:[#allocation7 + $0x1c] sm:$0xf]
        %v333 = vld [vmem:[#allocation7 + $0x20] sm:$0xf]
        %s334 = scalar_lea.vmem [#allocation7], 36
        %v335 = vld [vmem:[%s334] sm:$0xf]
        %v336 = vld [vmem:[%s334 + $0x4] sm:$0xf]
        %v337 = vld [vmem:[%s334 + $0x8] sm:$0xf]
        %v338 = vld [vmem:[%s334 + $0xc] sm:$0xf]
        %v339 = vld [vmem:[%s334 + $0x10] sm:$0xf]
        %v340 = vld [vmem:[%s334 + $0x14] sm:$0xf]
        %v341 = vld [vmem:[%s334 + $0x18] sm:$0xf]
        %v342 = vld [vmem:[%s334 + $0x1c] sm:$0xf]
        %v343 = vld [vmem:[%s334 + $0x20] sm:$0xf]
        %v344 = vshrl.u32 %v324, 16
        %v346 = vshll.u32 %v324, 16
        %v348 = vrot.slane %v346, 1
        %v349 = vor.u32 %v344, %v348
        %v359 = vunpack.c.l.b16 %v335
        %v360 = vunpack.c.l.b16 %v336
        %v361 = vunpack.c.l.b16 %v337
        %v362 = vunpack.c.l.b16 %v338
        %v363 = vunpack.c.l.b16 %v339
        %v364 = vunpack.c.l.b16 %v340
        %v365 = vunpack.c.l.b16 %v341
        %v366 = vunpack.c.l.b16 %v342
        %v367 = vunpack.c.l.b16 %v343
        %v368 = vpack.c.b16 %v360, %v359
        %v369 = vpack.c.b16 %v362, %v361
        %v370 = vpack.c.b16 %v364, %v363
        %v371 = vpack.c.b16 %v366, %v365
        %v372 = vpack.c.b16 %v367, %v367
        %vm377 = vcmask 588800
        %v379 = vsel %vm377, %v349, 0
        %v382 = vsel %vm322, %v372, 0
        %384 = vmatpush.bf16.msra.mxu0 0
        %385 = vmatpush.bf16.msra.mxu0 0
        %386 = vmatpush.bf16.msra.mxu0 0
        %387 = vmatpush.bf16.msra.mxu0 %v382
        %388 = vmatpush.bf16.msra.mxu0 %v371
        %389 = vmatpush.bf16.msra.mxu0 %v370
        %390 = vmatpush.bf16.msra.mxu0 %v369
        %391 = vmatpush.bf16.msra.mxu0 %v368
        %392 = vmatmul.bf16.gmra.mxu0 %v379
        %v393 = vpop.f32.mrf.mxu0
        %v394 = vadd.f32 0.0, %v393
        %v395 = vpop.f32.mrf.mxu0
        %396 = vdwg.mxu0
        %v406 = vunpack.c.l.b16 %v325
        %v407 = vunpack.c.l.b16 %v326
        %v408 = vunpack.c.l.b16 %v327
        %v409 = vunpack.c.l.b16 %v328
        %v410 = vunpack.c.l.b16 %v329
        %v411 = vunpack.c.l.b16 %v330
        %v412 = vunpack.c.l.b16 %v331
        %v413 = vunpack.c.l.b16 %v332
        %v414 = vunpack.c.l.b16 %v333
        %v415 = vpack.c.b16 %v407, %v406
        %v416 = vpack.c.b16 %v409, %v408
        %v417 = vpack.c.b16 %v411, %v410
        %v418 = vpack.c.b16 %v413, %v412
        %v419 = vpack.c.b16 %v414, %v414
        %v424 = vsel %vm377, %v324, 0
        %v427 = vsel %vm322, %v419, 0
        %429 = vmatpush.bf16.msra.mxu0 0
        %430 = vmatpush.bf16.msra.mxu0 0
        %431 = vmatpush.bf16.msra.mxu0 0
        %432 = vmatpush.bf16.msra.mxu0 %v427
        %433 = vmatpush.bf16.msra.mxu0 %v418
        %434 = vmatpush.bf16.msra.mxu0 %v417
        %435 = vmatpush.bf16.msra.mxu0 %v416
        %436 = vmatpush.bf16.msra.mxu0 %v415
        %437 = vmatmul.bf16.gmra.mxu0 %v424
        %v438 = vpop.f32.mrf.mxu0
        %v439 = vadd.f32 %v394, %v438
        %v440 = vpop.f32.mrf.mxu0
        %441 = vdwg.mxu0
        %s442 = scalar_lea.vmem [#allocation7], 72
        %v443 = vld [vmem:[%s442] sm:$0xf]
        %v444 = vld [vmem:[%s442 + $0x4] sm:$0xf]
        %v445 = vld [vmem:[%s442 + $0x8] sm:$0xf]
        %v446 = vld [vmem:[%s442 + $0xc] sm:$0xf]
        %v447 = vld [vmem:[%s442 + $0x10] sm:$0xf]
        %v448 = vld [vmem:[%s442 + $0x14] sm:$0xf]
        %v449 = vld [vmem:[%s442 + $0x18] sm:$0xf]
        %v450 = vld [vmem:[%s442 + $0x1c] sm:$0xf]
        %v451 = vld [vmem:[%s442 + $0x20] sm:$0xf]
        %v453 = vrot.slane %v324, 1
        %v463 = vunpack.c.l.b16 %v443
        %v464 = vunpack.c.l.b16 %v444
        %v465 = vunpack.c.l.b16 %v445
        %v466 = vunpack.c.l.b16 %v446
        %v467 = vunpack.c.l.b16 %v447
        %v468 = vunpack.c.l.b16 %v448
        %v469 = vunpack.c.l.b16 %v449
        %v470 = vunpack.c.l.b16 %v450
        %v471 = vunpack.c.l.b16 %v451
        %v472 = vpack.c.b16 %v464, %v463
        %v473 = vpack.c.b16 %v466, %v465
        %v474 = vpack.c.b16 %v468, %v467
        %v475 = vpack.c.b16 %v470, %v469
        %v476 = vpack.c.b16 %v471, %v471
        %v482 = vsel %vm377, %v453, 0
        %v485 = vsel %vm322, %v476, 0
        %487 = vmatpush.bf16.msra.mxu0 0
        %488 = vmatpush.bf16.msra.mxu0 0
        %489 = vmatpush.bf16.msra.mxu0 0
        %490 = vmatpush.bf16.msra.mxu0 %v485
        %491 = vmatpush.bf16.msra.mxu0 %v475
        %492 = vmatpush.bf16.msra.mxu0 %v474
        %493 = vmatpush.bf16.msra.mxu0 %v473
        %494 = vmatpush.bf16.msra.mxu0 %v472
        %495 = vmatmul.bf16.gmra.mxu0 %v482
        %v496 = vpop.f32.mrf.mxu0
        %v497 = vadd.f32 0.0, %v496
        %v498 = vpop.f32.mrf.mxu0
        %499 = vdwg.mxu0
        %v500 = vadd.f32 %v439, %v497
        %v501 = vld [vmem:[%s3] sm:$0x1]
        %v503 = vperm.slane %v501, 0
        %v505 = vmul.f32 %v500, %v503
        %v506 = vld [vmem:[%s4] sm:$0x1]
        %v508 = vperm.slane %v506, 0
        %v510 = vadd.f32 %v505, %v508
        %v511 = vxor.u32 %v510, 2147483648
        %v512 = vmul.f32 %v511, 1.442695
        %v513 = vpow.pop %v512
        %v514 = vadd.f32 %v513, 1.0
        %v515 = vrcp.pop %v514
        %v516 = vmul.f32 %v514, %v515
        %v517 = vsub.f32 1.0, %v516
        %v518 = vmul.f32 %v515, %v517
        %v519 = vadd.f32 %v515, %v518
        %vm520 = vweird.f32 %v514
        %vm521 = vweird.f32 %v515
        %vm522 = vmor %vm520, %vm521
        %v523 = vsel %vm522, %v515, %v519
        %v524 = vand.u32 2147483647, %v514
        %vm525 = vcmp.eq.f32.partialorder %v524, 8.507059e+37
        %v526 = vand.u32 %v514, 2147483648
        %v527 = vor.u32 1.1754944e-38, %v526
        %v528 = vsel %vm525, %v527, %v523
        %v529 = vmul.f32 1.0, %v528
        %v530 = vmul.f32 %v510, %v529
        %531 = vst [vmem:[%s314] sm:$0xff] %v530
        %s532 = sand.u32 %s166, 1
        %s533 = scalar_lea.sflag [#allocation4], %s532
        %s534 = sand.u32 %s166, 1
        %s535 = smul.addr %s534, 8
        %s536 = scalar_lea.vmem [#allocation8], %s535
        // Predicated region
        $region53: #{tpu_custom_call.1} parent=39 // pred_check
          %p537 = pneg %p176
        $region54: #{tpu_custom_call.1} parent=39 // pred_check_branch
          %539 = sbr.rel (%p537) target = $region56
        $region55: #{tpu_custom_call.1} parent=39 // pred_region
          %541 = vsyncadd %s533, 0
          %s542 = smul.addr %s29, 2
          %s543 = sadd.s32 %s30, %s542
          %s544 = smul.addr %s543, 8
          %s545 = scalar_lea.hbm %s5, %s544
          %s547 = sshll.u32 %s536, 4
          %s548 = int_to_ptr.vmem [resolvable:$true] %s547
          %s549 = sshll.u32 %s545, 4
          %s550 = int_to_ptr.hbm [resolvable:$true] %s549
          %552 = dma.vmem_to_hbm [thread:$0]  %s548, 128, %s550, %s533
        $region56: #{tpu_custom_call.1} parent=39 // pred_fallthru
          _
      $region40: #{tpu_custom_call.1} parent=5 // pred_fallthru
        _
      %p553 = scmp.le.s32.totalorder 2, %s20
      // Predicated region
      $region57: #{tpu_custom_call.1} parent=5 // pred_check
        %p554 = pneg %p553
      $region58: #{tpu_custom_call.1} parent=5 // pred_check_branch
        %556 = sbr.rel (%p554) target = $region60
      $region59: #{tpu_custom_call.1} parent=5 // pred_region
        %s557 = ssub.s32 %s20, 2
        // Predicated region
        $region61: #{tpu_custom_call.1} parent=59 // pred_check
          %p558 = pneg %p182
        $region62: #{tpu_custom_call.1} parent=59 // pred_check_branch
          %560 = sbr.rel (%p558) target = $region64
        $region63: #{tpu_custom_call.1} parent=59 // pred_region
          %s561 = sand.u32 %s167, 1
          %s562 = scalar_lea.sflag [#allocation4], %s561
          %s563 = sand.u32 %s167, 1
          %s564 = smul.addr %s563, 8
          %s565 = scalar_lea.vmem [#allocation8], %s564
          %567 = dma.done %s562, 128
        $region64: #{tpu_custom_call.1} parent=59 // pred_fallthru
          _
      $region60: #{tpu_custom_call.1} parent=5 // pred_fallthru
        _
    $region6: #{tpu_custom_call.1} parent=1 // loop_footer
      %s24 = sadd.s32 1, %s20
    $region7: #{tpu_custom_call.1} parent=1 // loop_footer_branch
      %19 = sbr.rel target = $region3
    $region8: #{tpu_custom_call.1} parent=1 // loop_exit
      _
    %568 = vsyncpa [#allocation3], 1
    %s569 = scalar_lea.sflag [#allocation3], 1
    %570 = vsyncpa %s569, 1
    %571 = vsyncpa [#allocation6], 1
    %s572 = scalar_lea.sflag [#allocation6], 1
    %573 = vsyncpa %s572, 1
    %574 = vsyncpa [#allocation4], 1
    %s575 = scalar_lea.sflag [#allocation4], 1
    %576 = vsyncpa %s575, 1

</llo_original>
